<compile_context>
chip_gen: v6e
topology: v6e:2x2x1
jax: 0.10.0
libtpu: 0.0.40
codegen_flags: <defaults>
</compile_context>

<pallas_src>
import functools

import jax
import jax.numpy as jnp
from jax.experimental import pallas as pl
from jax.experimental.pallas import tpu as pltpu


def _accuracy_kernel(pred_ref, tgt_ref, out_ref, *, total_n, tile_n):
    """One batch tile: first-occurrence argmax per row, compare with target,
    write this block's correct-count (broadcast over an (8,128) slab) to its
    own output block.  No cross-step state => grid axis is megacore-safe."""
    i = pl.program_id(0)

    pred = pred_ref[...]                     # (tn, C), native dtype
    tgt = tgt_ref[...]                       # (tn, 1), int32
    tn, c = pred.shape

    # Per-row max over classes (lane axis).
    row_max = jnp.max(pred, axis=1, keepdims=True)                   # (tn, 1)

    # First-occurrence argmax (matches torch.topk tie behaviour for k=1):
    # smallest column index attaining the row max.
    col_idx = jax.lax.broadcasted_iota(jnp.int32, (tn, c), 1)        # (tn, C)
    masked_idx = jnp.where(pred == row_max, col_idx, jnp.int32(c))
    argmax = jnp.min(masked_idx, axis=1, keepdims=True)              # (tn, 1)

    # Mask rows that fall past the true batch size (partial last tile).
    row_ids = jax.lax.broadcasted_iota(jnp.int32, (tn, 1), 0) + i * tile_n
    valid = row_ids < total_n
    correct = jnp.where(valid & (argmax == tgt),
                        jnp.float32(1.0), jnp.float32(0.0))          # (tn, 1)
    cnt = jnp.sum(correct)                                           # scalar f32

    # Lane-dense, unmasked store of this block's partial count.
    out_ref[...] = jnp.broadcast_to(cnt, out_ref.shape)


def _chip_tile_budget():
    """(per-tile pred byte budget, scoped-VMEM limit) per TPU generation."""
    kind = ""
    try:
        kind = jax.devices()[0].device_kind.lower()
    except Exception:
        pass
    if "v7" in kind or "7x" in kind:
        # v7x: ~3.2 TB/s per TC -> bigger tiles; 2 x 16 MiB fits 64 MiB VMEM.
        return 16 * 1024 * 1024, 48 * 1024 * 1024
    # v5e / v6e: 128 MiB physical VMEM; ~8 MiB tiles already reach ~85%+ of BW.
    return 8 * 1024 * 1024, 64 * 1024 * 1024


def bbox_forward(pred, target, *, tile_n=None):
    """JAX/Pallas equivalent of Bbox.forward(pred, target).

    pred:   (N, C) float array of class scores (kept in its native dtype)
    target: (N,)   int array of ground-truth class indices
    returns: list with one (1,) float32 array — top-1 accuracy in percent
             (same structure as the PyTorch module's output).
    """
    n, c = pred.shape
    target_2d = target.astype(jnp.int32).reshape(n, 1)
    itemsize = jnp.dtype(pred.dtype).itemsize

    tile_budget, vmem_limit = _chip_tile_budget()

    if tile_n is None:
        # Budget by the *lane-padded* VMEM footprint per row:
        #   pred row -> ceil(C/128)*128 * itemsize
        #   target (tile_n, 1) int32 column -> padded to 128 lanes * 4 B
        c_pad = pl.cdiv(c, 128) * 128
        bytes_per_row = c_pad * itemsize + 128 * 4
        sub = max(8, 32 // itemsize)               # sublane multiple per dtype
        tile_n = max(sub, tile_budget // bytes_per_row)
        tile_n = (tile_n // sub) * sub
    if n <= tile_n:
        tile_n = n                                  # single block == full dims
    grid_n = pl.cdiv(n, tile_n)

    kernel = functools.partial(_accuracy_kernel, total_n=n, tile_n=tile_n)

    cost = pl.CostEstimate(
        flops=3 * n * c,
        transcendentals=0,
        bytes_accessed=n * c * itemsize + 4 * n + grid_n * 8 * 128 * 4,
    )

    partial = pl.pallas_call(
        kernel,
        out_shape=jax.ShapeDtypeStruct((grid_n, 8, 128), jnp.float32),
        grid=(grid_n,),
        in_specs=[
            pl.BlockSpec((tile_n, c), lambda i: (i, 0)),   # pred tile
            pl.BlockSpec((tile_n, 1), lambda i: (i, 0)),   # target tile
        ],
        out_specs=pl.BlockSpec((1, 8, 128), lambda i: (i, 0, 0)),
        compiler_params=pltpu.CompilerParams(
            dimension_semantics=("parallel",),     # independent per-block counts
            vmem_limit_bytes=vmem_limit,
        ),
        cost_estimate=cost,
    )(pred, target_2d)

    counts = partial[:, 0, 0]                       # (grid_n,) partial counts
    acc = (jnp.sum(counts) * jnp.float32(100.0 / n)).reshape(1).astype(jnp.float32)
    return [acc]                                    # mimic PyTorch: list of one (1,) tensor


def _reference(pred, target):
    # Pure-JAX reference for correctness checking.
    p = jnp.argmax(pred, axis=1)
    return 100.0 * jnp.sum((p == target).astype(jnp.float32)) / pred.shape[0]


if __name__ == "__main__":
    key = jax.random.PRNGKey(0)
    k1, k2, k3, k4, k5, k6 = jax.random.split(key, 6)

    # Case 1: small batch, single block (block shape == full array dims).
    N1, C1 = 16, 32
    pred1 = jax.random.normal(k1, (N1, C1), dtype=jnp.float32)
    tgt1 = jax.random.randint(k2, (N1,), 0, C1, dtype=jnp.int32)
    out1 = bbox_forward(pred1, tgt1)
    jax.block_until_ready(out1)
    ref1 = _reference(pred1, tgt1)
    assert out1[0].shape == (1,)
    assert jnp.allclose(out1[0][0], ref1, atol=1e-5), (out1[0][0], ref1)

    # Case 2: multi-step grid with a partial last tile (N not a multiple of
    # the tile) to exercise the per-block partial counts + row masking path.
    N2, C2 = 20, 32
    pred2 = jax.random.normal(k3, (N2, C2), dtype=jnp.float32)
    tgt2 = jax.random.randint(k4, (N2,), 0, C2, dtype=jnp.int32)
    out2 = bbox_forward(pred2, tgt2, tile_n=8)   # grid = 3, last tile partial
    jax.block_until_ready(out2)
    ref2 = _reference(pred2, tgt2)
    assert out2[0].shape == (1,)
    assert jnp.allclose(out2[0][0], ref2, atol=1e-5), (out2[0][0], ref2)

    # Case 3: C > 128 (multi-lane-tile class axis) plus a partial last tile.
    N3, C3 = 200, 160
    pred3 = jax.random.normal(k5, (N3, C3), dtype=jnp.float32)
    tgt3 = jax.random.randint(k6, (N3,), 0, C3, dtype=jnp.int32)
    out3 = bbox_forward(pred3, tgt3, tile_n=64)  # grid = 4, last tile partial
    jax.block_until_ready(out3)
    ref3 = _reference(pred3, tgt3)
    assert out3[0].shape == (1,)
    assert jnp.allclose(out3[0][0], ref3, atol=1e-5), (out3[0][0], ref3)

    print("KERNEL_OK")
</pallas_src>

<mosaic_0001>
module attributes {stable_mosaic.version = 11 : i64} {
  func.func @_accuracy_kernel(%arg0: i32, %arg1: memref<16x32xf32, #tpu.memory_space<vmem>>, %arg2: memref<16x1xi32, #tpu.memory_space<vmem>>, %arg3: memref<1x8x128xf32, #tpu.memory_space<vmem>>) attributes {dimension_semantics = [#tpu.dimension_semantics<parallel>], iteration_bounds = array<i64: 1>, scalar_prefetch = 0 : i64, scratch_operands = 0 : i64, tpu.core_type = #tpu.core_type<tc>, window_params = [{transform_indices = @transform_0, window_bounds = array<i64: 16, 32>}, {transform_indices = @transform_1, window_bounds = array<i64: 16, 1>}, {transform_indices = @transform_2, window_bounds = array<i64: 1, 8, 128>}]} {
    %c0 = arith.constant 0 : index
    %c0_0 = arith.constant 0 : index
    %0 = vector.load %arg1[%c0, %c0_0] : memref<16x32xf32, #tpu.memory_space<vmem>>, vector<16x32xf32>
    %c0_1 = arith.constant 0 : index
    %c0_2 = arith.constant 0 : index
    %1 = vector.load %arg2[%c0_1, %c0_2] : memref<16x1xi32, #tpu.memory_space<vmem>>, vector<16x1xi32>
    %cst = arith.constant dense<0xFF800000> : vector<16xf32>
    %2 = vector.multi_reduction <maximumf>, %0, %cst [1] : vector<16x32xf32> to vector<16xf32>
    %3 = vector.shape_cast %2 : vector<16xf32> to vector<16x1xf32>
    %4 = tpu.iota {dimensions = array<i32: 1>} : vector<16x32xi32>
    %5 = vector.broadcast %3 : vector<16x1xf32> to vector<16x32xf32>
    %6 = arith.cmpf oeq, %0, %5 : vector<16x32xf32>
    %c32_i32 = arith.constant 32 : i32
    %7 = vector.broadcast %c32_i32 : i32 to vector<16x32xi32>
    %8 = arith.select %6, %4, %7 : vector<16x32xi1>, vector<16x32xi32>
    %cst_3 = arith.constant dense<2147483647> : vector<16xi32>
    %9 = vector.multi_reduction <minsi>, %8, %cst_3 [1] : vector<16x32xi32> to vector<16xi32>
    %10 = vector.shape_cast %9 : vector<16xi32> to vector<16x1xi32>
    %11 = tpu.iota {dimensions = array<i32: 0>} : vector<16x1xi32>
    %c16_i32 = arith.constant 16 : i32
    %12 = arith.muli %arg0, %c16_i32 : i32
    %13 = vector.broadcast %12 : i32 to vector<16x1xi32>
    %14 = arith.addi %11, %13 : vector<16x1xi32>
    %c16_i32_4 = arith.constant 16 : i32
    %15 = vector.broadcast %c16_i32_4 : i32 to vector<16x1xi32>
    %16 = arith.cmpi slt, %14, %15 : vector<16x1xi32>
    %17 = arith.cmpi eq, %10, %1 : vector<16x1xi32>
    %18 = arith.andi %16, %17 : vector<16x1xi1>
    %cst_5 = arith.constant 1.000000e+00 : f32
    %cst_6 = arith.constant 0.000000e+00 : f32
    %19 = vector.broadcast %cst_5 : f32 to vector<16x1xf32>
    %20 = vector.broadcast %cst_6 : f32 to vector<16x1xf32>
    %21 = arith.select %18, %19, %20 : vector<16x1xi1>, vector<16x1xf32>
    %22 = vector.shape_cast %21 : vector<16x1xf32> to vector<1x16x1xf32>
    %cst_7 = arith.constant dense<0.000000e+00> : vector<1xf32>
    %23 = vector.multi_reduction <add>, %22, %cst_7 [1, 2] : vector<1x16x1xf32> to vector<1xf32>
    %24 = vector.shape_cast %23 : vector<1xf32> to vector<1x1x1xf32>
    %25 = vector.extract %24[0, 0, 0] : f32 from vector<1x1x1xf32>
    %26 = vector.broadcast %25 : f32 to vector<1x8x128xf32>
    %c0_8 = arith.constant 0 : index
    %c0_9 = arith.constant 0 : index
    %c0_10 = arith.constant 0 : index
    %27 = vector.load %arg3[%c0_8, %c0_9, %c0_10] : memref<1x8x128xf32, #tpu.memory_space<vmem>>, vector<1x8x128xf32>
    tpu.vector_store %arg3[%c0_8, %c0_9, %c0_10], %26 {strides = array<i32>} : memref<1x8x128xf32, #tpu.memory_space<vmem>>, vector<1x8x128xf32>,
    return
  }
  func.func @transform_0(%arg0: i32) -> (i32, i32) {
    %c0_i32 = arith.constant 0 : i32
    %c0_i32_0 = arith.constant 0 : i32
    return %arg0, %c0_i32 : i32, i32
  }
  func.func @transform_1(%arg0: i32) -> (i32, i32) {
    %c0_i32 = arith.constant 0 : i32
    %c0_i32_0 = arith.constant 0 : i32
    return %arg0, %c0_i32 : i32, i32
  }
  func.func @transform_2(%arg0: i32) -> (i32, i32, i32) {
    %c0_i32 = arith.constant 0 : i32
    %c0_i32_0 = arith.constant 0 : i32
    %c0_i32_1 = arith.constant 0 : i32
    return %arg0, %c0_i32, %c0_i32_0 : i32, i32, i32
  }
}

</mosaic_0001>

<llo_original>
// kernel: tpu_custom_call.1
$region0: #{tpu_custom_call.1}
  #allocation0 [shape = 'u32[]', space=smem, size = 0x4, offset = 0x4, fixed_abs, tag = 'smem constant byte address 0x4 - core index']
  #allocation1 [shape = 'u32[144,128]{1,0:T(1,128)}', space=vmem, size = 0x12000, scoped, tag = 'internal scratch']
  %s0 = inlined_call_operand.vmem [shape: f32[16,32], index: 0, kind: input, shape index: {}]
  %s1 = inlined_call_operand.vmem [shape: s32[16,1], index: 1, kind: input, shape index: {}]
  %s2 = inlined_call_operand.hbm [shape: f32[1,8,128], index: 2, kind: output, shape index: {}]
  %s3 = sld [smem:[#allocation0]]
  $region18: #{tpu_custom_call.1} parent=0
    _
  %s5 = ssub.s32 1, %s3
  %s6 = scalar_select 0, %s5, %s3
  $region1: #{tpu_custom_call.1} parent=0
    #allocation2 [shape = 'u8[4096]{0}', space=vmem, size = 0x1000, scoped, tag = 'output window, operand 0, single buffered']
    #allocation3 [shape = 's32[1]{0}', space=sflag, size = 0x4, scoped, tag = 'scoped memory for tpu_custom_call.1']
    %7 = vsyncpa [#allocation3], 0
    // Predicated region
    $region2: #{tpu_custom_call.1} parent=1 // pred_check
      _
    $region3: #{tpu_custom_call.1} parent=1 // pred_check_branch
      %9 = sbr.rel (0) target = $region5
    $region4: #{tpu_custom_call.1} parent=1 // pred_region
      _
    $region5: #{tpu_custom_call.1} parent=1 // pred_fallthru
      _
    // Predicated region
    $region6: #{tpu_custom_call.1} parent=1 // pred_check
      _
    $region7: #{tpu_custom_call.1} parent=1 // pred_check_branch
      %11 = sbr.rel (0) target = $region9
    $region8: #{tpu_custom_call.1} parent=1 // pred_region
      _
    $region9: #{tpu_custom_call.1} parent=1 // pred_fallthru
      _
    %v12 = vld [vmem:[%s0] sm:$0xff]
    %v13 = vld [vmem:[%s0 + $0x8] sm:$0xff]
    %v14 = vld [vmem:[%s1] sm:$0xff]
    %v15 = vld [vmem:[%s1 + $0x8] sm:$0xff]
    %vm16 = vcmask 261120
    %v17 = vsel %vm16, %v12, -inf
    %18 = vmax.xlane.f32.xlu0 %v17
    %v19 = vpop.xlane.xlu0 %18
    %v20 = vsel %vm16, %v13, -inf
    %21 = vmax.xlane.f32.xlu0 %v20
    %v22 = vpop.xlane.xlu0 %21
    %v23 = vlaneseq
    %v24 = vand.u32 %v23, 127
    %vm25 = vcmp.eq.f32.partialorder %v12, %v19
    %vm26 = vcmp.eq.f32.partialorder %v13, %v22
    %v27 = vsel %vm25, %v24, 32
    %v28 = vsel %vm26, %v24, 32
    %v29 = vsel %vm16, %v27, 2147483647
    %v30 = vand.u32 %v29, 65535
    %v31 = vshra.s32 %v29, 16
    %v32 = vcvt.s32.f32 %v30
    %v33 = vcvt.s32.f32 %v31
    %34 = vmin.xlane.f32.xlu0 %v33
    %v35 = vpop.xlane.xlu0 %34
    %vm36 = vcmp.eq.f32.partialorder %v33, %v35
    %v37 = vsel %vm36, %v32, inf
    %38 = vmin.xlane.f32.xlu0 %v37
    %v39 = vpop.xlane.xlu0 %38
    %v40 = vcvt.f32.s32 %v39
    %v41 = vcvt.f32.s32 %v35
    %v42 = vshll.u32 %v41, 16
    %v43 = vadd.s32 %v42, %v40
    %v44 = vsel %vm16, %v28, 2147483647
    %v45 = vand.u32 %v44, 65535
    %v46 = vshra.s32 %v44, 16
    %v47 = vcvt.s32.f32 %v45
    %v48 = vcvt.s32.f32 %v46
    %49 = vmin.xlane.f32.xlu0 %v48
    %v50 = vpop.xlane.xlu0 %49
    %vm51 = vcmp.eq.f32.partialorder %v48, %v50
    %v52 = vsel %vm51, %v47, inf
    %53 = vmin.xlane.f32.xlu0 %v52
    %v54 = vpop.xlane.xlu0 %53
    %v55 = vcvt.f32.s32 %v54
    %v56 = vcvt.f32.s32 %v50
    %v57 = vshll.u32 %v56, 16
    %v58 = vadd.s32 %v57, %v55
    %v59 = vlaneseq
    %v60 = vshrl.u32 %v59, 7
    %v61 = vadd.s32 %v60, 8
    %s62 = smul.u32 0, 16
    %v63 = vstv %s62
    %v64 = vadd.s32 %v60, %v63
    %v65 = vadd.s32 %v61, %v63
    %vm66 = vcmp.lt.s32.totalorder %v64, 16
    %vm67 = vcmp.lt.s32.totalorder %v65, 16
    %vm68 = vcmp.eq.s32.totalorder %v43, %v14
    %vm69 = vcmp.eq.s32.totalorder %v58, %v15
    %vm70 = vmand %vm66, %vm68
    %vm71 = vmand %vm67, %vm69
    %v72 = vsel %vm70, 1.0, 0.0
    %v73 = vsel %vm71, 1.0, 0.0
    %vm74 = vcmask 7168
    %v75 = vsel %vm74, %v72, 0.0
    %v76 = vsel %vm74, %v73, 0.0
    %v77 = vadd.f32 %v75, %v76
    %78 = vadd.xlane.f32.xlu0 %v77
    %v79 = vpop.xlane.xlu0 %78
    %v80 = vrot.slane %v79, 4
    %v81 = vadd.f32 %v79, %v80
    %v82 = vrot.slane %v81, 2
    %v83 = vadd.f32 %v81, %v82
    %v84 = vrot.slane %v83, 1
    %v85 = vadd.f32 %v83, %v84
    %s86 = vtos %v85
    %v87 = vstv %s86
    %88 = vst [vmem:[#allocation2] sm:$0xff] %v87
    // Predicated region
    $region10: #{tpu_custom_call.1} parent=1 // pred_check
      _
    $region11: #{tpu_custom_call.1} parent=1 // pred_check_branch
      %90 = sbr.rel (0) target = $region13
    $region12: #{tpu_custom_call.1} parent=1 // pred_region
      %s92 = ssub.s32 128, 128
      %93 = vsyncadd [#allocation3], %s92
      %s95 = sshll.u32 [#allocation2], 4
      %s96 = int_to_ptr.vmem [resolvable:$true] %s95
      %98 = dma.vmem_to_hbm [thread:$0]  %s96, 128, %s2, [#allocation3]
    $region13: #{tpu_custom_call.1} parent=1 // pred_fallthru
      _
    // Predicated region
    $region14: #{tpu_custom_call.1} parent=1 // pred_check
      _
    $region15: #{tpu_custom_call.1} parent=1 // pred_check_branch
      %100 = sbr.rel (0) target = $region17
    $region16: #{tpu_custom_call.1} parent=1 // pred_region
      %101 = dma.done [#allocation3], 128
    $region17: #{tpu_custom_call.1} parent=1 // pred_fallthru
      _
    %102 = vsyncpa [#allocation3], 1

</llo_original>
